<compile_context>
chip_gen: v6e
topology: v6e:2x2x1
jax: 0.10.0
libtpu: 0.0.40
codegen_flags: <defaults>
</compile_context>

<pallas_src>
import functools
from math import pi as PI

import jax
import jax.numpy as jnp
from jax.experimental import pallas as pl
from jax.experimental.pallas import tpu as pltpu

LANES = 128
SUBLANES = 8
TM_MAX = 2048          # rows per block: 2048*128*4B = 1 MiB per f32 input block
TWO_PI = 2.0 * PI
INV_TWO_PI = 1.0 / (2.0 * PI)


def _round_up(x, m):
    return ((x + m - 1) // m) * m


def _wrapped_smooth_l1_kernel(inp_ref, tgt_ref, part_ref, *,
                              beta, half_over_beta, half_beta):
    """One (tm, 128) block -> one independent (8, 128) f32 partial sum."""
    d = tgt_ref[...].astype(jnp.float32) - inp_ref[...].astype(jnp.float32)
    # Wrap into [-pi, pi): remainder(d + pi, 2*pi) - pi, computed as
    # d - 2*pi*floor((d + pi) * (1/(2*pi))). At exact +/-pi boundaries the floor
    # may differ from torch.remainder by one period, flipping the sign of the
    # wrapped value — harmless here because the loss depends only on |d|.
    d = d - TWO_PI * jnp.floor((d + PI) * INV_TWO_PI)
    ad = jnp.abs(d)
    loss = jnp.where(ad < beta, d * d * half_over_beta, ad - half_beta)
    # Zero-padded tail elements yield d == 0 -> loss == 0 (requires beta > 0),
    # so no mask is needed; the mean divides by the true element count outside.
    # The (tm,128)->(tm/8,8,128) reshape matches the f32 (8,128) vreg tiling,
    # so the reduction is pure per-vreg VALU adds (no hidden VMEM copy).
    part_ref[0] = loss.reshape(-1, SUBLANES, LANES).sum(axis=0)


def wrapped_smooth_l1_loss(inp, tgt, beta=0.1 * PI):
    assert inp.shape == tgt.shape
    total = int(inp.size)
    if total == 0:
        # torch.mean over an empty tensor is NaN; make that explicit.
        return jnp.float32(float("nan"))

    # Flatten row-major into (rows, 128); blocks of (tm, 128) with tm a multiple
    # of 8, chosen so the blocks cover the array with minimal padding.
    rows = pl.cdiv(total, LANES)
    rows8 = _round_up(rows, SUBLANES)
    num_blocks = pl.cdiv(rows8, TM_MAX)
    tm = _round_up(pl.cdiv(rows8, num_blocks), SUBLANES)   # <= TM_MAX
    padded_rows = num_blocks * tm
    pad = padded_rows * LANES - total

    inp_f = inp.reshape(-1)
    tgt_f = tgt.reshape(-1)
    if pad:
        # Only hit when total is not 1024-aligned (rare for real tensors); the
        # aligned common case reshapes in place with no extra HBM traffic.
        inp_f = jnp.pad(inp_f, (0, pad))
        tgt_f = jnp.pad(tgt_f, (0, pad))
    inp_f = inp_f.reshape(padded_rows, LANES)
    tgt_f = tgt_f.reshape(padded_rows, LANES)

    kernel = functools.partial(
        _wrapped_smooth_l1_kernel,
        beta=float(beta),
        half_over_beta=0.5 / float(beta),
        half_beta=0.5 * float(beta),
    )

    # Independent per-block partials: no carried state, so the grid axis is
    # "parallel" and can be split across TensorCores (v7x megacore).
    partials = pl.pallas_call(
        kernel,
        out_shape=jax.ShapeDtypeStruct((num_blocks, SUBLANES, LANES), jnp.float32),
        grid=(num_blocks,),
        in_specs=[
            pl.BlockSpec((tm, LANES), lambda i: (i, 0)),
            pl.BlockSpec((tm, LANES), lambda i: (i, 0)),
        ],
        out_specs=pl.BlockSpec((1, SUBLANES, LANES), lambda i: (i, 0, 0)),
        compiler_params=pltpu.CompilerParams(
            dimension_semantics=("parallel",)),
    )(inp_f, tgt_f)

    # Tiny final reduction (num_blocks * 1024 f32) + divide by the true count.
    return jnp.sum(partials) / jnp.float32(total)


def _reference(inp, tgt, beta=0.1 * PI):
    d = jnp.mod((tgt.astype(jnp.float32) - inp.astype(jnp.float32)) + PI,
                2.0 * PI) - PI
    ad = jnp.abs(d)
    return jnp.mean(jnp.where(ad < beta, 0.5 * d * d / beta, ad - 0.5 * beta))


if __name__ == "__main__":
    key = jax.random.PRNGKey(0)
    k1, k2 = jax.random.split(key)
    # angle-like tensors: (batch=2, seq=8, hidden=32), values spanning past [-pi, pi]
    shape = (2, 8, 32)
    x = jax.random.uniform(k1, shape, jnp.float32, minval=-PI, maxval=PI)
    t = jax.random.uniform(k2, shape, jnp.float32, minval=-1.5 * PI, maxval=1.5 * PI)

    loss = wrapped_smooth_l1_loss(x, t)
    jax.block_until_ready(loss)

    ref = _reference(x, t)
    assert jnp.allclose(loss, ref, rtol=1e-5, atol=1e-6), (loss, ref)
    print("KERNEL_OK")
</pallas_src>

<mosaic_0001>
module attributes {stable_mosaic.version = 11 : i64} {
  func.func @_wrapped_smooth_l1_kernel(%arg0: i32, %arg1: memref<8x128xf32, #tpu.memory_space<vmem>>, %arg2: memref<8x128xf32, #tpu.memory_space<vmem>>, %arg3: memref<1x8x128xf32, #tpu.memory_space<vmem>>) attributes {dimension_semantics = [#tpu.dimension_semantics<parallel>], iteration_bounds = array<i64: 1>, scalar_prefetch = 0 : i64, scratch_operands = 0 : i64, tpu.core_type = #tpu.core_type<tc>, window_params = [{transform_indices = @transform_0, window_bounds = array<i64: 8, 128>}, {transform_indices = @transform_1, window_bounds = array<i64: 8, 128>}, {transform_indices = @transform_2, window_bounds = array<i64: 1, 8, 128>}]} {
    %c0 = arith.constant 0 : index
    %c0_0 = arith.constant 0 : index
    %0 = vector.load %arg2[%c0, %c0_0] : memref<8x128xf32, #tpu.memory_space<vmem>>, vector<8x128xf32>
    %c0_1 = arith.constant 0 : index
    %c0_2 = arith.constant 0 : index
    %1 = vector.load %arg1[%c0_1, %c0_2] : memref<8x128xf32, #tpu.memory_space<vmem>>, vector<8x128xf32>
    %2 = arith.subf %0, %1 : vector<8x128xf32>
    %cst = arith.constant 3.14159274 : f32
    %3 = vector.broadcast %cst : f32 to vector<8x128xf32>
    %4 = arith.addf %2, %3 : vector<8x128xf32>
    %cst_3 = arith.constant 0.159154937 : f32
    %5 = vector.broadcast %cst_3 : f32 to vector<8x128xf32>
    %6 = arith.mulf %4, %5 : vector<8x128xf32>
    %7 = math.floor %6 : vector<8x128xf32>
    %cst_4 = arith.constant 6.28318548 : f32
    %8 = vector.broadcast %cst_4 : f32 to vector<8x128xf32>
    %9 = arith.mulf %8, %7 : vector<8x128xf32>
    %10 = arith.subf %2, %9 : vector<8x128xf32>
    %11 = math.absf %10 : vector<8x128xf32>
    %cst_5 = arith.constant 0.314159274 : f32
    %12 = vector.broadcast %cst_5 : f32 to vector<8x128xf32>
    %13 = arith.cmpf olt, %11, %12 : vector<8x128xf32>
    %14 = arith.mulf %10, %10 : vector<8x128xf32>
    %cst_6 = arith.constant 1.5915494 : f32
    %15 = vector.broadcast %cst_6 : f32 to vector<8x128xf32>
    %16 = arith.mulf %14, %15 : vector<8x128xf32>
    %cst_7 = arith.constant 0.157079637 : f32
    %17 = vector.broadcast %cst_7 : f32 to vector<8x128xf32>
    %18 = arith.subf %11, %17 : vector<8x128xf32>
    %19 = arith.select %13, %16, %18 : vector<8x128xi1>, vector<8x128xf32>
    %20 = vector.shape_cast %19 : vector<8x128xf32> to vector<1x8x128xf32>
    %cst_8 = arith.constant dense<0.000000e+00> : vector<8x128xf32>
    %21 = vector.multi_reduction <add>, %20, %cst_8 [0] : vector<1x8x128xf32> to vector<8x128xf32>
    %c0_9 = arith.constant 0 : index
    %c0_10 = arith.constant 0 : index
    %c0_11 = arith.constant 0 : index
    %22 = vector.load %arg3[%c0_9, %c0_10, %c0_11] : memref<1x8x128xf32, #tpu.memory_space<vmem>>, vector<1x8x128xf32>
    %23 = vector.shape_cast %22 : vector<1x8x128xf32> to vector<8x128xf32>
    %24 = vector.shape_cast %21 : vector<8x128xf32> to vector<1x8x128xf32>
    tpu.vector_store %arg3[%c0_9, %c0_10, %c0_11], %24 {strides = array<i32>} : memref<1x8x128xf32, #tpu.memory_space<vmem>>, vector<1x8x128xf32>,
    return
  }
  func.func @transform_0(%arg0: i32) -> (i32, i32) {
    %c0_i32 = arith.constant 0 : i32
    %c0_i32_0 = arith.constant 0 : i32
    return %arg0, %c0_i32 : i32, i32
  }
  func.func @transform_1(%arg0: i32) -> (i32, i32) {
    %c0_i32 = arith.constant 0 : i32
    %c0_i32_0 = arith.constant 0 : i32
    return %arg0, %c0_i32 : i32, i32
  }
  func.func @transform_2(%arg0: i32) -> (i32, i32, i32) {
    %c0_i32 = arith.constant 0 : i32
    %c0_i32_0 = arith.constant 0 : i32
    %c0_i32_1 = arith.constant 0 : i32
    return %arg0, %c0_i32, %c0_i32_0 : i32, i32, i32
  }
}

</mosaic_0001>

<llo_original>
// kernel: tpu_custom_call.1
$region0: #{tpu_custom_call.1}
  #allocation0 [shape = 'u32[]', space=smem, size = 0x4, offset = 0x4, fixed_abs, tag = 'smem constant byte address 0x4 - core index']
  #allocation1 [shape = 'u32[144,128]{1,0:T(1,128)}', space=vmem, size = 0x12000, scoped, tag = 'internal scratch']
  %s0 = inlined_call_operand.hbm [shape: f32[8,128], index: 0, kind: input, shape index: {}]
  %s1 = inlined_call_operand.hbm [shape: f32[8,128], index: 1, kind: input, shape index: {}]
  %s2 = inlined_call_operand.hbm [shape: f32[1,8,128], index: 2, kind: output, shape index: {}]
  %s3 = sld [smem:[#allocation0]]
  $region26: #{tpu_custom_call.1} parent=0
    _
  %s5 = ssub.s32 1, %s3
  %s6 = scalar_select 0, %s5, %s3
  $region1: #{tpu_custom_call.1} parent=0
    #allocation2 [shape = 'u8[4096]{0}', space=vmem, size = 0x1000, scoped, tag = 'input window, operand 0, single buffered']
    #allocation3 [shape = 's32[1]{0}', space=sflag, size = 0x4, scoped, tag = 'scoped memory for tpu_custom_call.1']
    #allocation4 [shape = 's32[1]{0}', space=sflag, size = 0x4, scoped, tag = 'scoped memory for tpu_custom_call.1']
    #allocation5 [shape = 'u8[4096]{0}', space=vmem, size = 0x1000, scoped, tag = 'input window, operand 1, single buffered']
    #allocation6 [shape = 's32[1]{0}', space=sflag, size = 0x4, scoped, tag = 'scoped memory for tpu_custom_call.1']
    #allocation7 [shape = 'u8[4096]{0}', space=vmem, size = 0x1000, scoped, tag = 'output window, operand 0, single buffered']
    %7 = vsyncpa [#allocation3], 0
    %8 = vsyncpa [#allocation6], 0
    %9 = vsyncpa [#allocation4], 0
    // Predicated region
    $region2: #{tpu_custom_call.1} parent=1 // pred_check
      _
    $region3: #{tpu_custom_call.1} parent=1 // pred_check_branch
      %11 = sbr.rel (0) target = $region5
    $region4: #{tpu_custom_call.1} parent=1 // pred_region
      %s13 = ssub.s32 128, 128
      %14 = vsyncadd [#allocation3], %s13
      %s16 = sshll.u32 [#allocation2], 4
      %s17 = int_to_ptr.vmem [resolvable:$true] %s16
      %19 = dma.hbm_to_vmem [thread:$0]  %s0, 128, %s17, [#allocation3]
    $region5: #{tpu_custom_call.1} parent=1 // pred_fallthru
      _
    // Predicated region
    $region6: #{tpu_custom_call.1} parent=1 // pred_check
      _
    $region7: #{tpu_custom_call.1} parent=1 // pred_check_branch
      %21 = sbr.rel (0) target = $region9
    $region8: #{tpu_custom_call.1} parent=1 // pred_region
      %s23 = ssub.s32 128, 128
      %24 = vsyncadd [#allocation6], %s23
      %s26 = sshll.u32 [#allocation5], 4
      %s27 = int_to_ptr.vmem [resolvable:$true] %s26
      %29 = dma.hbm_to_vmem [thread:$0]  %s1, 128, %s27, [#allocation6]
    $region9: #{tpu_custom_call.1} parent=1 // pred_fallthru
      _
    // Predicated region
    $region10: #{tpu_custom_call.1} parent=1 // pred_check
      _
    $region11: #{tpu_custom_call.1} parent=1 // pred_check_branch
      %31 = sbr.rel (0) target = $region13
    $region12: #{tpu_custom_call.1} parent=1 // pred_region
      %32 = dma.done [#allocation3], 128
    $region13: #{tpu_custom_call.1} parent=1 // pred_fallthru
      _
    // Predicated region
    $region14: #{tpu_custom_call.1} parent=1 // pred_check
      _
    $region15: #{tpu_custom_call.1} parent=1 // pred_check_branch
      %34 = sbr.rel (0) target = $region17
    $region16: #{tpu_custom_call.1} parent=1 // pred_region
      %35 = dma.done [#allocation6], 128
    $region17: #{tpu_custom_call.1} parent=1 // pred_fallthru
      _
    %v36 = vld [vmem:[#allocation5] sm:$0xff]
    %v37 = vld [vmem:[#allocation2] sm:$0xff]
    %v38 = vsub.f32 %v36, %v37
    %v39 = vadd.f32 %v38, 3.1415927
    %v40 = vmul.f32 %v39, 0.15915494
    %v41 = vfloor.f32 %v40
    %v42 = vmul.f32 %v41, 6.2831855
    %v43 = vsub.f32 %v38, %v42
    %v44 = vand.u32 2147483647, %v43
    %vm45 = vcmp.lt.f32.partialorder %v44, 0.31415927
    %v46 = vmul.f32 %v43, %v43
    %v47 = vmul.f32 %v46, 1.5915494
    %v48 = vsub.f32 %v44, 0.15707964
    %v49 = vsel %vm45, %v47, %v48
    %v50 = vadd.f32 %v49, 0.0
    %51 = vst [vmem:[#allocation7] sm:$0xff] %v50
    // Predicated region
    $region18: #{tpu_custom_call.1} parent=1 // pred_check
      _
    $region19: #{tpu_custom_call.1} parent=1 // pred_check_branch
      %53 = sbr.rel (0) target = $region21
    $region20: #{tpu_custom_call.1} parent=1 // pred_region
      %s55 = ssub.s32 128, 128
      %56 = vsyncadd [#allocation4], %s55
      %s58 = sshll.u32 [#allocation7], 4
      %s59 = int_to_ptr.vmem [resolvable:$true] %s58
      %61 = dma.vmem_to_hbm [thread:$0]  %s59, 128, %s2, [#allocation4]
    $region21: #{tpu_custom_call.1} parent=1 // pred_fallthru
      _
    // Predicated region
    $region22: #{tpu_custom_call.1} parent=1 // pred_check
      _
    $region23: #{tpu_custom_call.1} parent=1 // pred_check_branch
      %63 = sbr.rel (0) target = $region25
    $region24: #{tpu_custom_call.1} parent=1 // pred_region
      %64 = dma.done [#allocation4], 128
    $region25: #{tpu_custom_call.1} parent=1 // pred_fallthru
      _
    %65 = vsyncpa [#allocation3], 1
    %66 = vsyncpa [#allocation6], 1
    %67 = vsyncpa [#allocation4], 1

</llo_original>
